<compile_context>
chip_gen: v7x
topology: tpu7x:2x2x1
jax: 0.10.0
libtpu: 0.0.40
codegen_flags: <defaults>
</compile_context>

<pallas_src>
import functools
import math

import jax
import jax.numpy as jnp
from jax.experimental import pallas as pl
from jax.experimental.pallas import tpu as pltpu

_LANE = 128      # lane (last-dim) width of every block
_SUBLANE = 8     # sublane granularity for f32


def _round_up(x, m):
    return (x + m - 1) // m * m


def _custom_loss_kernel(inv_n, yp_ref, yt_ref, o_ref, sse_ref, sae_ref):
    """One grid step over a (tile_rows, 128) slab of both inputs.

    sse_ref / sae_ref: (1, 128) f32 VMEM running partial sums of d^2 and |d|.
    o_ref:             (1, 1) f32 VMEM output, written on the last step only.
    """
    step = pl.program_id(0)

    @pl.when(step == 0)
    def _init():
        sse_ref[...] = jnp.zeros_like(sse_ref)
        sae_ref[...] = jnp.zeros_like(sae_ref)

    # Difference computed once, reused for both loss terms (f32 accumulation).
    d = yp_ref[...].astype(jnp.float32) - yt_ref[...].astype(jnp.float32)
    sse_ref[...] += jnp.sum(d * d, axis=0, keepdims=True)
    sae_ref[...] += jnp.sum(jnp.abs(d), axis=0, keepdims=True)

    @pl.when(step == pl.num_programs(0) - 1)
    def _finalize():
        sse = jnp.sum(sse_ref[...], axis=1, keepdims=True)   # (1, 1)
        sae = jnp.sum(sae_ref[...], axis=1, keepdims=True)   # (1, 1)
        loss = jnp.sqrt(sse * inv_n) + sae * inv_n            # sqrt(MSE) + MAE
        o_ref[...] = loss.astype(o_ref.dtype)


def custom_loss(y_pred, y_true, *, block_rows=2048):
    """sqrt(mean((y_pred - y_true)^2)) + mean(|y_pred - y_true|), any shape."""
    assert y_pred.shape == y_true.shape, "y_pred / y_true shape mismatch"
    n = math.prod(y_pred.shape)

    # Lane-dense 2D view of the flattened data, padded to a whole number of
    # (tile_rows, 128) blocks.
    rows = max(_round_up(pl.cdiv(n, _LANE), _SUBLANE), _SUBLANE)
    tile_rows = _round_up(min(block_rows, rows), _SUBLANE)
    rows_p = _round_up(rows, tile_rows)
    padded = rows_p * _LANE

    def _prep(a):
        flat = a.reshape(-1)
        if padded != n:
            flat = jnp.pad(flat, (0, padded - n))
        return flat.reshape(rows_p, _LANE)

    yp2d = _prep(y_pred)
    yt2d = _prep(y_true)
    num_blocks = rows_p // tile_rows

    # VMEM budget: 2 inputs x 2 pipeline buffers x one block each (+ slack).
    block_bytes = tile_rows * _LANE * jnp.dtype(yp2d.dtype).itemsize
    vmem_limit = min(max(4 * block_bytes + (2 << 20), 16 << 20), 48 << 20)

    kernel = functools.partial(_custom_loss_kernel, float(1.0 / n))

    out = pl.pallas_call(
        kernel,
        out_shape=jax.ShapeDtypeStruct((1, 1), jnp.float32),
        grid_spec=pltpu.PrefetchScalarGridSpec(
            num_scalar_prefetch=0,
            grid=(num_blocks,),
            in_specs=[
                pl.BlockSpec((tile_rows, _LANE), lambda i: (i, 0)),   # y_pred
                pl.BlockSpec((tile_rows, _LANE), lambda i: (i, 0)),   # y_true
            ],
            out_specs=pl.BlockSpec((1, 1), lambda i: (0, 0)),
            scratch_shapes=[
                pltpu.VMEM((1, _LANE), jnp.float32),   # sum of squared diffs
                pltpu.VMEM((1, _LANE), jnp.float32),   # sum of abs diffs
            ],
        ),
        compiler_params=pltpu.CompilerParams(
            # Single shared accumulator across the grid -> sequential axis.
            dimension_semantics=("arbitrary",),
            vmem_limit_bytes=int(vmem_limit)),
    )(yp2d, yt2d)

    return out[0, 0]


def reference_loss(y_pred, y_true):
    d = y_pred - y_true
    return jnp.sqrt(jnp.mean(d * d)) + jnp.mean(jnp.abs(d))


if __name__ == "__main__":
    key = jax.random.PRNGKey(0)
    kp, kt = jax.random.split(key)
    shape = (2, 4, 16, 16)
    y_pred = jax.random.normal(kp, shape, jnp.float32)
    y_true = jax.random.normal(kt, shape, jnp.float32)

    # Default (single grid step at this tiny size).
    out = jax.block_until_ready(custom_loss(y_pred, y_true))
    ref = reference_loss(y_pred, y_true)
    assert out.shape == ()
    assert jnp.allclose(out, ref, atol=1e-5, rtol=1e-5), "mismatch vs reference"

    # Small blocks -> multi-step grid, exercises the cross-step accumulators.
    out2 = jax.block_until_ready(custom_loss(y_pred, y_true, block_rows=8))
    assert jnp.allclose(out2, ref, atol=1e-5, rtol=1e-5), "multi-step mismatch"

    # Non-divisible element count -> exercises the zero-padded tail path.
    yp_odd = y_pred.reshape(-1)[:1000]
    yt_odd = y_true.reshape(-1)[:1000]
    out3 = jax.block_until_ready(custom_loss(yp_odd, yt_odd))
    ref3 = reference_loss(yp_odd, yt_odd)
    assert jnp.allclose(out3, ref3, atol=1e-5, rtol=1e-5), "padded-tail mismatch"

    print("KERNEL_OK")
</pallas_src>

<mosaic_0001>
module attributes {stable_mosaic.version = 11 : i64} {
  func.func @_custom_loss_kernel(%arg0: i32, %arg1: memref<16x128xf32, #tpu.memory_space<vmem>>, %arg2: memref<16x128xf32, #tpu.memory_space<vmem>>, %arg3: memref<1x1xf32, #tpu.memory_space<vmem>>, %arg4: memref<1x128xf32, #tpu.memory_space<vmem>>, %arg5: memref<1x128xf32, #tpu.memory_space<vmem>>) attributes {dimension_semantics = [#tpu.dimension_semantics<arbitrary>], iteration_bounds = array<i64: 1>, scalar_prefetch = 0 : i64, scratch_operands = 2 : i64, tpu.core_type = #tpu.core_type<tc>, window_params = [{transform_indices = @transform_0, window_bounds = array<i64: 16, 128>}, {transform_indices = @transform_1, window_bounds = array<i64: 16, 128>}, {pipeline_mode = #tpu.pipeline_mode<synchronous>, transform_indices = @transform_2, window_bounds = array<i64: 1, 1>}]} {
    %c0_i32 = arith.constant 0 : i32
    %0 = arith.cmpi eq, %arg0, %c0_i32 : i32
    %1 = arith.extui %0 : i1 to i32
    %c0_i32_0 = arith.constant 0 : i32
    %2 = arith.cmpi ne, %1, %c0_i32_0 : i32
    scf.if %2 {
      %cst_15 = arith.constant 0.000000e+00 : f32
      %21 = vector.broadcast %cst_15 : f32 to vector<1x128xf32>
      %c0_16 = arith.constant 0 : index
      %c0_17 = arith.constant 0 : index
      %22 = vector.load %arg4[%c0_16, %c0_17] : memref<1x128xf32, #tpu.memory_space<vmem>>, vector<1x128xf32>
      tpu.vector_store %arg4[%c0_16, %c0_17], %21 {strides = array<i32>} : memref<1x128xf32, #tpu.memory_space<vmem>>, vector<1x128xf32>,
      %cst_18 = arith.constant 0.000000e+00 : f32
      %23 = vector.broadcast %cst_18 : f32 to vector<1x128xf32>
      %c0_19 = arith.constant 0 : index
      %c0_20 = arith.constant 0 : index
      %24 = vector.load %arg5[%c0_19, %c0_20] : memref<1x128xf32, #tpu.memory_space<vmem>>, vector<1x128xf32>
      tpu.vector_store %arg5[%c0_19, %c0_20], %23 {strides = array<i32>} : memref<1x128xf32, #tpu.memory_space<vmem>>, vector<1x128xf32>,
    } else {
    }
    %c0 = arith.constant 0 : index
    %c0_1 = arith.constant 0 : index
    %3 = vector.load %arg1[%c0, %c0_1] : memref<16x128xf32, #tpu.memory_space<vmem>>, vector<16x128xf32>
    %c0_2 = arith.constant 0 : index
    %c0_3 = arith.constant 0 : index
    %4 = vector.load %arg2[%c0_2, %c0_3] : memref<16x128xf32, #tpu.memory_space<vmem>>, vector<16x128xf32>
    %5 = arith.subf %3, %4 : vector<16x128xf32>
    %c0_4 = arith.constant 0 : index
    %c0_5 = arith.constant 0 : index
    %6 = vector.load %arg4[%c0_4, %c0_5] : memref<1x128xf32, #tpu.memory_space<vmem>>, vector<1x128xf32>
    %7 = arith.mulf %5, %5 : vector<16x128xf32>
    %cst = arith.constant dense<0.000000e+00> : vector<128xf32>
    %8 = vector.multi_reduction <add>, %7, %cst [0] : vector<16x128xf32> to vector<128xf32>
    %9 = vector.shape_cast %8 : vector<128xf32> to vector<1x128xf32>
    %10 = arith.addf %6, %9 : vector<1x128xf32>
    %c0_6 = arith.constant 0 : index
    %c0_7 = arith.constant 0 : index
    %11 = vector.load %arg4[%c0_6, %c0_7] : memref<1x128xf32, #tpu.memory_space<vmem>>, vector<1x128xf32>
    tpu.vector_store %arg4[%c0_6, %c0_7], %10 {strides = array<i32>} : memref<1x128xf32, #tpu.memory_space<vmem>>, vector<1x128xf32>,
    %c0_8 = arith.constant 0 : index
    %c0_9 = arith.constant 0 : index
    %12 = vector.load %arg5[%c0_8, %c0_9] : memref<1x128xf32, #tpu.memory_space<vmem>>, vector<1x128xf32>
    %13 = math.absf %5 : vector<16x128xf32>
    %cst_10 = arith.constant dense<0.000000e+00> : vector<128xf32>
    %14 = vector.multi_reduction <add>, %13, %cst_10 [0] : vector<16x128xf32> to vector<128xf32>
    %15 = vector.shape_cast %14 : vector<128xf32> to vector<1x128xf32>
    %16 = arith.addf %12, %15 : vector<1x128xf32>
    %c0_11 = arith.constant 0 : index
    %c0_12 = arith.constant 0 : index
    %17 = vector.load %arg5[%c0_11, %c0_12] : memref<1x128xf32, #tpu.memory_space<vmem>>, vector<1x128xf32>
    tpu.vector_store %arg5[%c0_11, %c0_12], %16 {strides = array<i32>} : memref<1x128xf32, #tpu.memory_space<vmem>>, vector<1x128xf32>,
    %c0_i32_13 = arith.constant 0 : i32
    %18 = arith.cmpi eq, %arg0, %c0_i32_13 : i32
    %19 = arith.extui %18 : i1 to i32
    %c0_i32_14 = arith.constant 0 : i32
    %20 = arith.cmpi ne, %19, %c0_i32_14 : i32
    scf.if %20 {
      %c0_15 = arith.constant 0 : index
      %c0_16 = arith.constant 0 : index
      %21 = vector.load %arg4[%c0_15, %c0_16] : memref<1x128xf32, #tpu.memory_space<vmem>>, vector<1x128xf32>
      %cst_17 = arith.constant dense<0.000000e+00> : vector<1xf32>
      %22 = vector.multi_reduction <add>, %21, %cst_17 [1] : vector<1x128xf32> to vector<1xf32>
      %23 = vector.shape_cast %22 : vector<1xf32> to vector<1x1xf32>
      %c0_18 = arith.constant 0 : index
      %c0_19 = arith.constant 0 : index
      %24 = vector.load %arg5[%c0_18, %c0_19] : memref<1x128xf32, #tpu.memory_space<vmem>>, vector<1x128xf32>
      %cst_20 = arith.constant dense<0.000000e+00> : vector<1xf32>
      %25 = vector.multi_reduction <add>, %24, %cst_20 [1] : vector<1x128xf32> to vector<1xf32>
      %26 = vector.shape_cast %25 : vector<1xf32> to vector<1x1xf32>
      %cst_21 = arith.constant 4.8828125E-4 : f32
      %27 = vector.broadcast %cst_21 : f32 to vector<1x1xf32>
      %28 = arith.mulf %23, %27 : vector<1x1xf32>
      %29 = math.sqrt %28 : vector<1x1xf32>
      %cst_22 = arith.constant 4.8828125E-4 : f32
      %30 = vector.broadcast %cst_22 : f32 to vector<1x1xf32>
      %31 = arith.mulf %26, %30 : vector<1x1xf32>
      %32 = arith.addf %29, %31 : vector<1x1xf32>
      %c0_23 = arith.constant 0 : index
      %c0_24 = arith.constant 0 : index
      %33 = vector.load %arg3[%c0_23, %c0_24] : memref<1x1xf32, #tpu.memory_space<vmem>>, vector<1x1xf32>
      tpu.vector_store %arg3[%c0_23, %c0_24], %32 {strides = array<i32>} : memref<1x1xf32, #tpu.memory_space<vmem>>, vector<1x1xf32>,
    } else {
    }
    return
  }
  func.func @transform_0(%arg0: i32) -> (i32, i32) {
    %c0_i32 = arith.constant 0 : i32
    %c0_i32_0 = arith.constant 0 : i32
    return %arg0, %c0_i32 : i32, i32
  }
  func.func @transform_1(%arg0: i32) -> (i32, i32) {
    %c0_i32 = arith.constant 0 : i32
    %c0_i32_0 = arith.constant 0 : i32
    return %arg0, %c0_i32 : i32, i32
  }
  func.func @transform_2(%arg0: i32) -> (i32, i32) {
    %c0_i32 = arith.constant 0 : i32
    %c0_i32_0 = arith.constant 0 : i32
    %c0_i32_1 = arith.constant 0 : i32
    return %c0_i32, %c0_i32_0 : i32, i32
  }
}

</mosaic_0001>

<llo_original>
// kernel: tpu_custom_call.1
$region0: #{tpu_custom_call.1}
  #allocation0 [shape = 'u32[]', space=smem, size = 0x4, offset = 0x4, fixed_abs, tag = 'smem constant byte address 0x4 - core index']
  #allocation1 [shape = 'u32[144,128]{1,0:T(1,128)}', space=vmem, size = 0x12000, scoped, tag = 'internal scratch']
  #allocation2 [shape = 'f32[1,128]{1,0:T(1,128)}', space=vmem, size = 0x200, scoped, tag = 'scratch operand']
  #allocation3 [shape = 'f32[1,128]{1,0:T(1,128)}', space=vmem, size = 0x200, scoped, tag = 'scratch operand']
  %s0 = inlined_call_operand.hbm [shape: f32[16,128], index: 0, kind: input, shape index: {}]
  %s1 = inlined_call_operand.hbm [shape: f32[16,128], index: 1, kind: input, shape index: {}]
  %s2 = inlined_call_operand.hbm [shape: f32[1,1], index: 2, kind: output, shape index: {}]
  %s3 = sld [smem:[#allocation0]]
  $region34: #{tpu_custom_call.1} parent=0
    _
  %s5 = ssub.s32 1, %s3
  %s6 = scalar_select 0, %s5, %s3
  $region1: #{tpu_custom_call.1} parent=0
    #allocation4 [shape = 'u8[8192]{0}', space=vmem, size = 0x2000, scoped, tag = 'input window, operand 0, single buffered']
    #allocation5 [shape = 's32[1]{0}', space=sflag, size = 0x4, scoped, tag = 'scoped memory for tpu_custom_call.1']
    #allocation6 [shape = 's32[1]{0}', space=sflag, size = 0x4, scoped, tag = 'scoped memory for tpu_custom_call.1']
    #allocation7 [shape = 'u8[8192]{0}', space=vmem, size = 0x2000, scoped, tag = 'input window, operand 1, single buffered']
    #allocation8 [shape = 's32[1]{0}', space=sflag, size = 0x4, scoped, tag = 'scoped memory for tpu_custom_call.1']
    #allocation9 [shape = 'u8[512]{0}', space=vmem, size = 0x400, scoped, tag = 'output window, operand 0, single buffered']
    %7 = vsyncpa [#allocation5], 0
    %8 = vsyncpa [#allocation8], 0
    %9 = vsyncpa [#allocation6], 0
    // Predicated region
    $region2: #{tpu_custom_call.1} parent=1 // pred_check
      _
    $region3: #{tpu_custom_call.1} parent=1 // pred_check_branch
      %11 = sbr.rel (0) target = $region5
    $region4: #{tpu_custom_call.1} parent=1 // pred_region
      %s13 = ssub.s32 256, 256
      %14 = vsyncadd [#allocation5], %s13
      %s15 = sshll.u32 [#allocation4], 4
      %s16 = int_to_ptr.vmem [resolvable:$true] %s15
      %21 = dma.hbm_to_vmem [thread:$0]  %s0, 256, %s16, [#allocation5], 128, 128, 8
    $region5: #{tpu_custom_call.1} parent=1 // pred_fallthru
      _
    // Predicated region
    $region6: #{tpu_custom_call.1} parent=1 // pred_check
      _
    $region7: #{tpu_custom_call.1} parent=1 // pred_check_branch
      %23 = sbr.rel (0) target = $region9
    $region8: #{tpu_custom_call.1} parent=1 // pred_region
      %s25 = ssub.s32 256, 256
      %26 = vsyncadd [#allocation8], %s25
      %s27 = sshll.u32 [#allocation7], 4
      %s28 = int_to_ptr.vmem [resolvable:$true] %s27
      %33 = dma.hbm_to_vmem [thread:$0]  %s1, 256, %s28, [#allocation8], 128, 128, 8
    $region9: #{tpu_custom_call.1} parent=1 // pred_fallthru
      _
    // Predicated region
    $region10: #{tpu_custom_call.1} parent=1 // pred_check
      _
    $region11: #{tpu_custom_call.1} parent=1 // pred_check_branch
      %35 = sbr.rel (0) target = $region13
    $region12: #{tpu_custom_call.1} parent=1 // pred_region
      %36 = dma.done [#allocation5], 256
    $region13: #{tpu_custom_call.1} parent=1 // pred_fallthru
      _
    // Predicated region
    $region14: #{tpu_custom_call.1} parent=1 // pred_check
      _
    $region15: #{tpu_custom_call.1} parent=1 // pred_check_branch
      %38 = sbr.rel (0) target = $region17
    $region16: #{tpu_custom_call.1} parent=1 // pred_region
      %39 = dma.done [#allocation8], 256
    $region17: #{tpu_custom_call.1} parent=1 // pred_fallthru
      _
    %p40 = scmp.eq.s32.totalorder 0, 0
    // Predicated region
    $region18: #{tpu_custom_call.1} parent=1 // pred_check
      %p41 = pneg %p40
    $region19: #{tpu_custom_call.1} parent=1 // pred_check_branch
      %43 = sbr.rel (%p41) target = $region21
    $region20: #{tpu_custom_call.1} parent=1 // pred_region
      %44 = vst [vmem:[#allocation2] sm:$0x1] 0.0
      %45 = vst [vmem:[#allocation3] sm:$0x1] 0.0
    $region21: #{tpu_custom_call.1} parent=1 // pred_fallthru
      _
    %v46 = vld [vmem:[#allocation4] sm:$0xff]
    %v47 = vld [vmem:[#allocation4 + $0x8] sm:$0xff]
    %v48 = vld [vmem:[#allocation7] sm:$0xff]
    %v49 = vld [vmem:[#allocation7 + $0x8] sm:$0xff]
    %v50 = vsub.f32 %v46, %v48
    %v51 = vsub.f32 %v47, %v49
    %v52 = vld [vmem:[#allocation2] sm:$0x1]
    %v53 = vmul.f32 %v50, %v50
    %v54 = vmul.f32 %v51, %v51
    %v55 = vadd.f32 %v53, %v54
    %v56 = vrot.slane %v55, 4
    %v57 = vadd.f32 %v55, %v56
    %v58 = vrot.slane %v57, 2
    %v59 = vadd.f32 %v57, %v58
    %v60 = vrot.slane %v59, 1
    %v61 = vadd.f32 %v59, %v60
    %v62 = vadd.f32 %v52, %v61
    %63 = vst [vmem:[#allocation2] sm:$0x1] %v62
    %v64 = vld [vmem:[#allocation3] sm:$0x1]
    %v65 = vand.u32 2147483647, %v50
    %v66 = vand.u32 2147483647, %v51
    %v67 = vadd.f32 %v65, %v66
    %v68 = vrot.slane %v67, 4
    %v69 = vadd.f32 %v67, %v68
    %v70 = vrot.slane %v69, 2
    %v71 = vadd.f32 %v69, %v70
    %v72 = vrot.slane %v71, 1
    %v73 = vadd.f32 %v71, %v72
    %v74 = vadd.f32 %v64, %v73
    %75 = vst [vmem:[#allocation3] sm:$0x1] %v74
    // Predicated region
    $region22: #{tpu_custom_call.1} parent=1 // pred_check
      %p76 = pneg %p40
    $region23: #{tpu_custom_call.1} parent=1 // pred_check_branch
      %78 = sbr.rel (%p76) target = $region25
    $region24: #{tpu_custom_call.1} parent=1 // pred_region
      %v79 = vld [vmem:[#allocation2] sm:$0x1]
      %vm80 = vcmask 1040384
      %v81 = vsel %vm80, %v79, 0.0
      %82 = vadd.xlane.f32.xlu0 %v81
      %v83 = vpop.xlane.xlu0 %82
      %v84 = vld [vmem:[#allocation3] sm:$0x1]
      %v85 = vsel %vm80, %v84, 0.0
      %86 = vadd.xlane.f32.xlu0 %v85
      %v87 = vpop.xlane.xlu0 %86
      %v88 = vmul.f32 %v83, 0.00048828125
      %v89 = vrsqrt.pop %v88
      %v90 = vmul.f32 %v88, %v89
      %vm91 = vcmp.eq.f32.partialorder %v88, inf
      %v92 = vsel %vm91, %v88, %v90
      %vm93 = vcmp.eq.f32.partialorder %v88, 0.0
      %v94 = vand.u32 %v88, 2147483648
      %v95 = vsel %vm93, %v94, %v92
      %v96 = vmul.f32 %v87, 0.00048828125
      %v97 = vadd.f32 %v95, %v96
      %vm98 = vcmask 0
      %99 = vst.msk [vmem:[#allocation9] sm:$0x1] %vm98, %v97
    $region25: #{tpu_custom_call.1} parent=1 // pred_fallthru
      _
    // Predicated region
    $region26: #{tpu_custom_call.1} parent=1 // pred_check
      _
    $region27: #{tpu_custom_call.1} parent=1 // pred_check_branch
      %101 = sbr.rel (0) target = $region29
    $region28: #{tpu_custom_call.1} parent=1 // pred_region
      %s103 = ssub.s32 16, 16
      %104 = vsyncadd [#allocation6], %s103
      %s106 = sshll.u32 [#allocation9], 4
      %s107 = int_to_ptr.vmem [resolvable:$true] %s106
      %109 = dma.vmem_to_hbm [thread:$0]  %s107, 16, %s2, [#allocation6]
    $region29: #{tpu_custom_call.1} parent=1 // pred_fallthru
      _
    // Predicated region
    $region30: #{tpu_custom_call.1} parent=1 // pred_check
      _
    $region31: #{tpu_custom_call.1} parent=1 // pred_check_branch
      %111 = sbr.rel (0) target = $region33
    $region32: #{tpu_custom_call.1} parent=1 // pred_region
      %112 = dma.done [#allocation6], 16
    $region33: #{tpu_custom_call.1} parent=1 // pred_fallthru
      _
    %113 = vsyncpa [#allocation5], 1
    %114 = vsyncpa [#allocation8], 1
    %115 = vsyncpa [#allocation6], 1

</llo_original>
